<compile_context>
chip_gen: v7x
topology: tpu7x:2x2x1
jax: 0.10.0
libtpu: 0.0.40
codegen_flags: <defaults>
</compile_context>

<pallas_src>
import functools
import math

import jax
import jax.numpy as jnp
from jax.experimental import pallas as pl
from jax.experimental.pallas import tpu as pltpu


def _round_up(x, m):
    return (x + m - 1) // m * m


def _vmem_limit_bytes():
    """Generation-aware VMEM budget (v5e/v6e: 128 MiB physical, v7x: 64 MiB)."""
    cap = 64 * 1024 * 1024  # conservative default if the query is unavailable
    try:
        cap = int(pltpu.get_tpu_info().vmem_capacity_bytes)
    except Exception:
        pass
    return int(min(cap * 3 // 4, 96 * 1024 * 1024))


def _choose_tile_b(B, s, D, C, x_itemsize, limit_bytes):
    """Rows of B per block.

    Accounts for lane padding (last dim padded to 128 in VMEM), double buffering of
    the pipelined input/output blocks, and the f32 intermediates (z1/h1/z2) held in
    the kernel.  Keeps tile_m = tile_b * s a multiple of 16 (bf16 sublane packing)
    and, when the batch is large enough, keeps at least two tiles so the "parallel"
    grid axis can be split across the two v7x TensorCores.
    """
    Dp = _round_up(D, 128)
    Cp = _round_up(C, 128)
    # alignment of tile_b so both tile_b and tile_b*s are sublane-tile friendly
    align = 8
    while (align * s) % 16 != 0:
        align *= 2
    per_b = (
        2 * s * Dp * x_itemsize     # x tile, double-buffered input
        + 2 * 2 * Cp * 4            # max / min output tiles, double-buffered
        + 3 * s * Cp * 4            # z1 / h1 / z2 f32 intermediates inside the kernel
    )
    budget = int(limit_bytes * 0.6)  # headroom for weights, stats, compiler scratch
    tb = max(align, budget // max(per_b, 1) // align * align)
    B_align = _round_up(B, align)
    if B_align >= 2 * align:         # keep grid >= 2 for megacore when possible
        tb = min(tb, _round_up((B_align + 1) // 2, align))
    tb = min(tb, B_align)
    return int(tb)


# ----------------------------- kernels --------------------------------------


def _conv1_stats_kernel(x_ref, w1_ref, sum_ref, sq_ref, *, precision):
    # x_ref: (TM, D), w1_ref: (D, C), sum_ref/sq_ref: (1, 1, C)
    z1 = jnp.dot(x_ref[...], w1_ref[...], precision=precision,
                 preferred_element_type=jnp.float32)
    # Zero-padded x rows give z1 == 0 and contribute nothing to the stats.
    sum_ref[...] = jnp.sum(z1, axis=0, keepdims=True)[None]
    sq_ref[...] = jnp.sum(z1 * z1, axis=0, keepdims=True)[None]


def _bn1_relu_conv2_pool_kernel(x_ref, w1_ref, w2_ref, scale1_ref, shift1_ref,
                                max_ref, min_ref, sum_ref, sq_ref,
                                *, tile_b, s, m_true, need_mask, precision):
    # x_ref:(TM,D) w1:(D,C) w2:(C,C) scale1/shift1:(1,C)
    # max_ref/min_ref:(TB,C) sum_ref/sq_ref:(1,1,C)
    tile_m = tile_b * s
    z1 = jnp.dot(x_ref[...], w1_ref[...], precision=precision,
                 preferred_element_type=jnp.float32)
    h1 = jnp.maximum(z1 * scale1_ref[...] + shift1_ref[...], 0.0)
    if need_mask:
        # Zero padded rows so they contribute nothing to the BN2 stats.
        row = (jax.lax.broadcasted_iota(jnp.int32, (tile_m, 1), 0)
               + pl.program_id(0) * tile_m)
        h1 = jnp.where(row < m_true, h1, 0.0)
    z2 = jnp.dot(h1.astype(w2_ref.dtype), w2_ref[...], precision=precision,
                 preferred_element_type=jnp.float32)
    sum_ref[...] = jnp.sum(z2, axis=0, keepdims=True)[None]
    sq_ref[...] = jnp.sum(z2 * z2, axis=0, keepdims=True)[None]
    # Tiles cover whole B rows, so the per-row max/min over s is a local reshape.
    z2_rows = z2.reshape(tile_b, s, -1)
    max_ref[...] = jnp.max(z2_rows, axis=1)
    min_ref[...] = jnp.min(z2_rows, axis=1)


# ----------------------------- wrapper --------------------------------------


def _bn_fold(sum_, sumsq, m_true, gamma, beta, eps):
    """Fold training-mode (biased-variance) BN into a per-channel scale/shift (f32)."""
    mean = sum_ / m_true
    # NOTE: E[z^2]-E[z]^2 in f32; acceptable here since conv outputs are roughly
    # centered and unit-scale.  Switch to per-tile centered moments if activations
    # become large / strongly offset.
    var = jnp.maximum(sumsq / m_true - mean * mean, 0.0)
    scale = gamma.astype(jnp.float32) / jnp.sqrt(var + eps)
    shift = beta.astype(jnp.float32) - mean * scale
    return scale.reshape(1, -1), shift.reshape(1, -1)


def init_local_op_params(key, in_channels, out_channels):
    k1, k2, k3, k4, k5, k6 = jax.random.split(key, 6)
    C = out_channels
    w1 = jax.random.normal(k1, (C, in_channels), jnp.float32) / math.sqrt(in_channels)
    w2 = jax.random.normal(k2, (C, C), jnp.float32) / math.sqrt(C)
    # PyTorch default BN init is gamma=1, beta=0 for both branches; the ssl branch is
    # perturbed here only so the flag selection is observable in the test.
    return {
        "w1": w1, "w2": w2,
        "gamma1": jnp.ones((C,), jnp.float32), "beta1": jnp.zeros((C,), jnp.float32),
        "gamma1_ssl": 1.0 + 0.1 * jax.random.normal(k3, (C,), jnp.float32),
        "beta1_ssl": 0.1 * jax.random.normal(k4, (C,), jnp.float32),
        "gamma2": jnp.ones((C,), jnp.float32), "beta2": jnp.zeros((C,), jnp.float32),
        "gamma2_ssl": 1.0 + 0.1 * jax.random.normal(k5, (C,), jnp.float32),
        "beta2_ssl": 0.1 * jax.random.normal(k6, (C,), jnp.float32),
    }


def local_op_forward(x, params, flag=False, eps=1e-3, compute_dtype=jnp.bfloat16):
    """x: (b, n, s, d) -> (b, out_channels, n).  `flag` selects the Dual_BN branch.

    compute_dtype is the dtype of the matmul operands (bf16 halves HBM traffic);
    stats, BN folding and accumulation are always f32.
    """
    b, n, s, d = x.shape
    C = params["w1"].shape[0]
    D = d
    B = b * n
    M = B * s

    is_f32 = jnp.dtype(compute_dtype) == jnp.dtype(jnp.float32)
    precision = jax.lax.Precision.HIGHEST if is_f32 else None

    w1t = jnp.transpose(params["w1"]).astype(compute_dtype)   # (D, C) - tiny
    w2t = jnp.transpose(params["w2"]).astype(compute_dtype)   # (C, C) - tiny

    # Dual_BN branch selection (jit-safe even for traced boolean flags).
    g1 = jnp.where(flag, params["gamma1_ssl"], params["gamma1"])
    b1 = jnp.where(flag, params["beta1_ssl"], params["beta1"])
    g2 = jnp.where(flag, params["gamma2_ssl"], params["gamma2"])
    b2 = jnp.where(flag, params["beta2_ssl"], params["beta2"])

    # Free reshape: (b,n,s,d) is contiguous with (M, d); the 1x1 Conv1d over the
    # permuted (B, d, s) tensor is exactly x2 @ W1^T, and BN1d stats over (B, s)
    # are stats over axis 0 of the flattened form.
    x2 = x.reshape(M, D).astype(compute_dtype)

    limit = _vmem_limit_bytes()
    tile_b = _choose_tile_b(B, s, D, C, jnp.dtype(compute_dtype).itemsize, limit)
    tile_m = tile_b * s
    B_pad = _round_up(B, tile_b)
    M_pad = B_pad * s
    grid_m = M_pad // tile_m
    if M_pad != M:
        x2 = jnp.pad(x2, ((0, M_pad - M), (0, 0)))  # zero rows -> zero conv1 output

    cparams = pltpu.CompilerParams(
        dimension_semantics=("parallel",), vmem_limit_bytes=limit)

    # ---- pass A: per-tile sum / sum-of-squares of z1 = x @ W1^T (BN1 stats) -----
    sum1_p, sq1_p = pl.pallas_call(
        functools.partial(_conv1_stats_kernel, precision=precision),
        out_shape=(jax.ShapeDtypeStruct((grid_m, 1, C), jnp.float32),
                   jax.ShapeDtypeStruct((grid_m, 1, C), jnp.float32)),
        grid=(grid_m,),
        in_specs=[
            pl.BlockSpec((tile_m, D), lambda i: (i, 0)),
            pl.BlockSpec((D, C), lambda i: (0, 0)),
        ],
        out_specs=(
            pl.BlockSpec((1, 1, C), lambda i: (i, 0, 0)),
            pl.BlockSpec((1, 1, C), lambda i: (i, 0, 0)),
        ),
        compiler_params=cparams,
    )(x2, w1t)
    scale1, shift1 = _bn_fold(jnp.sum(sum1_p[:, 0, :], axis=0),
                              jnp.sum(sq1_p[:, 0, :], axis=0), M, g1, b1, eps)

    # ---- pass B: BN1 + ReLU + conv2, BN2 per-tile stats and per-(B-row, channel)
    # ---- max/min of z2 over s (the max-pool is finished in JAX below; no z2 HBM trip)
    zmax_p, zmin_p, sum2_p, sq2_p = pl.pallas_call(
        functools.partial(_bn1_relu_conv2_pool_kernel, tile_b=tile_b, s=s,
                          m_true=M, need_mask=(M_pad != M), precision=precision),
        out_shape=(jax.ShapeDtypeStruct((B_pad, C), jnp.float32),
                   jax.ShapeDtypeStruct((B_pad, C), jnp.float32),
                   jax.ShapeDtypeStruct((grid_m, 1, C), jnp.float32),
                   jax.ShapeDtypeStruct((grid_m, 1, C), jnp.float32)),
        grid=(grid_m,),
        in_specs=[
            pl.BlockSpec((tile_m, D), lambda i: (i, 0)),
            pl.BlockSpec((D, C), lambda i: (0, 0)),
            pl.BlockSpec((C, C), lambda i: (0, 0)),
            pl.BlockSpec((1, C), lambda i: (0, 0)),
            pl.BlockSpec((1, C), lambda i: (0, 0)),
        ],
        out_specs=(
            pl.BlockSpec((tile_b, C), lambda i: (i, 0)),
            pl.BlockSpec((tile_b, C), lambda i: (i, 0)),
            pl.BlockSpec((1, 1, C), lambda i: (i, 0, 0)),
            pl.BlockSpec((1, 1, C), lambda i: (i, 0, 0)),
        ),
        compiler_params=cparams,
    )(x2, w1t, w2t, scale1, shift1)
    scale2, shift2 = _bn_fold(jnp.sum(sum2_p[:, 0, :], axis=0),
                              jnp.sum(sq2_p[:, 0, :], axis=0), M, g2, b2, eps)

    # ---- max-pool through the monotone BN2 affine + ReLU, on tiny (B, C) tensors --
    zmax = zmax_p[:B]
    zmin = zmin_p[:B]
    pooled = jnp.where(scale2 >= 0.0,
                       jnp.maximum(zmax * scale2 + shift2, 0.0),
                       jnp.maximum(zmin * scale2 + shift2, 0.0))
    return pooled.reshape(b, n, C).transpose(0, 2, 1).astype(x.dtype)


# ----------------------------- reference & test -----------------------------


def local_op_reference(x, params, flag=False, eps=1e-3):
    b, n, s, d = x.shape
    xp = jnp.transpose(x, (0, 1, 3, 2)).reshape(-1, d, s)  # (B, d, s)
    g1 = jnp.where(flag, params["gamma1_ssl"], params["gamma1"])
    be1 = jnp.where(flag, params["beta1_ssl"], params["beta1"])
    g2 = jnp.where(flag, params["gamma2_ssl"], params["gamma2"])
    be2 = jnp.where(flag, params["beta2_ssl"], params["beta2"])

    def bn(z, gamma, beta):
        mean = jnp.mean(z, axis=(0, 2), keepdims=True)
        var = jnp.mean((z - mean) ** 2, axis=(0, 2), keepdims=True)
        return (z - mean) / jnp.sqrt(var + eps) * gamma[None, :, None] + beta[None, :, None]

    z1 = jnp.einsum("bds,cd->bcs", xp, params["w1"],
                    precision=jax.lax.Precision.HIGHEST)
    h1 = jax.nn.relu(bn(z1, g1, be1))
    z2 = jnp.einsum("bcs,ec->bes", h1, params["w2"],
                    precision=jax.lax.Precision.HIGHEST)
    h2 = jax.nn.relu(bn(z2, g2, be2))
    pooled = jnp.max(h2, axis=2)                         # (B, C)
    return pooled.reshape(b, n, -1).transpose(0, 2, 1)   # (b, C, n)


if __name__ == "__main__":
    key = jax.random.PRNGKey(0)
    kx, kp = jax.random.split(key)
    b, n, s, d = 2, 4, 16, 8
    out_channels = 16

    x = jax.random.normal(kx, (b, n, s, d), dtype=jnp.float32)
    params = init_local_op_params(kp, d, out_channels)

    r0 = local_op_reference(x, params, flag=False)
    r1 = local_op_reference(x, params, flag=True)

    # f32 compute path: tight tolerance against the HIGHEST-precision reference.
    y0_f32 = jax.block_until_ready(
        local_op_forward(x, params, flag=False, compute_dtype=jnp.float32))
    y1_f32 = jax.block_until_ready(
        local_op_forward(x, params, flag=True, compute_dtype=jnp.float32))
    assert y0_f32.shape == (b, out_channels, n)
    assert y1_f32.shape == (b, out_channels, n)
    err0 = float(jnp.max(jnp.abs(y0_f32 - r0)))
    err1 = float(jnp.max(jnp.abs(y1_f32 - r1)))
    assert err0 < 2e-3, f"f32 flag=False max err {err0}"
    assert err1 < 2e-3, f"f32 flag=True max err {err1}"

    # Default bf16-operand fast path (f32 accumulation / stats): looser tolerance.
    y0_bf = jax.block_until_ready(local_op_forward(x, params, flag=False))
    y1_bf = jax.block_until_ready(local_op_forward(x, params, flag=True))
    err0b = float(jnp.max(jnp.abs(y0_bf - r0)))
    err1b = float(jnp.max(jnp.abs(y1_bf - r1)))
    assert err0b < 1e-1, f"bf16 flag=False max err {err0b}"
    assert err1b < 1e-1, f"bf16 flag=True max err {err1b}"

    print("KERNEL_OK")
</pallas_src>

<mosaic_0001>
module attributes {stable_mosaic.version = 11 : i64} {
  func.func @_conv1_stats_kernel(%arg0: i32, %arg1: memref<128x8xf32, #tpu.memory_space<vmem>>, %arg2: memref<8x16xf32, #tpu.memory_space<vmem>>, %arg3: memref<1x1x16xf32, #tpu.memory_space<vmem>>, %arg4: memref<1x1x16xf32, #tpu.memory_space<vmem>>) attributes {dimension_semantics = [#tpu.dimension_semantics<parallel>], iteration_bounds = array<i64: 1>, scalar_prefetch = 0 : i64, scratch_operands = 0 : i64, tpu.core_type = #tpu.core_type<tc>, window_params = [{transform_indices = @transform_0, window_bounds = array<i64: 128, 8>}, {pipeline_mode = #tpu.pipeline_mode<synchronous>, transform_indices = @transform_1, window_bounds = array<i64: 8, 16>}, {transform_indices = @transform_2, window_bounds = array<i64: 1, 1, 16>}, {transform_indices = @transform_3, window_bounds = array<i64: 1, 1, 16>}]} {
    %c0 = arith.constant 0 : index
    %c0_0 = arith.constant 0 : index
    %0 = vector.load %arg1[%c0, %c0_0] : memref<128x8xf32, #tpu.memory_space<vmem>>, vector<128x8xf32>
    %c0_1 = arith.constant 0 : index
    %c0_2 = arith.constant 0 : index
    %1 = vector.load %arg2[%c0_1, %c0_2] : memref<8x16xf32, #tpu.memory_space<vmem>>, vector<8x16xf32>
    %cst = arith.constant dense<0.000000e+00> : vector<128x16xf32>
    %2 = tpu.matmul %0, %1, %cst {dimension_numbers = #tpu.dot_dimension_numbers<[1], [0], [0], [1], [0, 0, 1, 1], [], []>, precision = #tpu.contract_precision<fp32>} : vector<128x8xf32>, vector<8x16xf32>, vector<128x16xf32> -> vector<128x16xf32>
    %cst_3 = arith.constant dense<0.000000e+00> : vector<16xf32>
    %3 = vector.multi_reduction <add>, %2, %cst_3 [0] : vector<128x16xf32> to vector<16xf32>
    %4 = vector.shape_cast %3 : vector<16xf32> to vector<1x16xf32>
    %5 = vector.shape_cast %4 : vector<1x16xf32> to vector<1x1x16xf32>
    %c0_4 = arith.constant 0 : index
    %c0_5 = arith.constant 0 : index
    %c0_6 = arith.constant 0 : index
    %6 = vector.load %arg3[%c0_4, %c0_5, %c0_6] : memref<1x1x16xf32, #tpu.memory_space<vmem>>, vector<1x1x16xf32>
    tpu.vector_store %arg3[%c0_4, %c0_5, %c0_6], %5 {strides = array<i32>} : memref<1x1x16xf32, #tpu.memory_space<vmem>>, vector<1x1x16xf32>,
    %7 = arith.mulf %2, %2 : vector<128x16xf32>
    %cst_7 = arith.constant dense<0.000000e+00> : vector<16xf32>
    %8 = vector.multi_reduction <add>, %7, %cst_7 [0] : vector<128x16xf32> to vector<16xf32>
    %9 = vector.shape_cast %8 : vector<16xf32> to vector<1x16xf32>
    %10 = vector.shape_cast %9 : vector<1x16xf32> to vector<1x1x16xf32>
    %c0_8 = arith.constant 0 : index
    %c0_9 = arith.constant 0 : index
    %c0_10 = arith.constant 0 : index
    %11 = vector.load %arg4[%c0_8, %c0_9, %c0_10] : memref<1x1x16xf32, #tpu.memory_space<vmem>>, vector<1x1x16xf32>
    tpu.vector_store %arg4[%c0_8, %c0_9, %c0_10], %10 {strides = array<i32>} : memref<1x1x16xf32, #tpu.memory_space<vmem>>, vector<1x1x16xf32>,
    return
  }
  func.func @transform_0(%arg0: i32) -> (i32, i32) {
    %c0_i32 = arith.constant 0 : i32
    %c0_i32_0 = arith.constant 0 : i32
    return %arg0, %c0_i32 : i32, i32
  }
  func.func @transform_1(%arg0: i32) -> (i32, i32) {
    %c0_i32 = arith.constant 0 : i32
    %c0_i32_0 = arith.constant 0 : i32
    %c0_i32_1 = arith.constant 0 : i32
    return %c0_i32, %c0_i32_0 : i32, i32
  }
  func.func @transform_2(%arg0: i32) -> (i32, i32, i32) {
    %c0_i32 = arith.constant 0 : i32
    %c0_i32_0 = arith.constant 0 : i32
    %c0_i32_1 = arith.constant 0 : i32
    return %arg0, %c0_i32, %c0_i32_0 : i32, i32, i32
  }
  func.func @transform_3(%arg0: i32) -> (i32, i32, i32) {
    %c0_i32 = arith.constant 0 : i32
    %c0_i32_0 = arith.constant 0 : i32
    %c0_i32_1 = arith.constant 0 : i32
    return %arg0, %c0_i32, %c0_i32_0 : i32, i32, i32
  }
}

</mosaic_0001>

<llo_original>
// kernel: tpu_custom_call.1
$region0: #{tpu_custom_call.1}
  #allocation0 [shape = 'u32[]', space=smem, size = 0x4, offset = 0x4, fixed_abs, tag = 'smem constant byte address 0x4 - core index']
  #allocation1 [shape = 'u32[144,128]{1,0:T(1,128)}', space=vmem, size = 0x12000, scoped, tag = 'internal scratch']
  %s0 = inlined_call_operand.vmem [shape: f32[128,8], index: 0, kind: input, shape index: {}]
  %s1 = inlined_call_operand.vmem [shape: f32[8,16], index: 1, kind: input, shape index: {}]
  %s2 = inlined_call_operand.hbm [shape: f32[1,1,16], index: 2, kind: output, shape index: {0}]
  %s3 = inlined_call_operand.hbm [shape: f32[1,1,16], index: 3, kind: output, shape index: {1}]
  %4 = xla_tuple %s2, %s3
  %s5 = sld [smem:[#allocation0]]
  $region26: #{tpu_custom_call.1} parent=0
    _
  %s7 = ssub.s32 1, %s5
  %s8 = scalar_select 0, %s7, %s5
  $region1: #{tpu_custom_call.1} parent=0
    #allocation2 [shape = 'u8[512]{0}', space=vmem, size = 0x400, scoped, tag = 'output window, operand 0, single buffered']
    #allocation3 [shape = 's32[1]{0}', space=sflag, size = 0x4, scoped, tag = 'scoped memory for tpu_custom_call.1']
    #allocation4 [shape = 'u8[512]{0}', space=vmem, size = 0x400, scoped, tag = 'output window, operand 1, single buffered']
    #allocation5 [shape = 's32[1]{0}', space=sflag, size = 0x4, scoped, tag = 'scoped memory for tpu_custom_call.1']
    %9 = vsyncpa [#allocation3], 0
    %10 = vsyncpa [#allocation5], 0
    // Predicated region
    $region2: #{tpu_custom_call.1} parent=1 // pred_check
      _
    $region3: #{tpu_custom_call.1} parent=1 // pred_check_branch
      %12 = sbr.rel (0) target = $region5
    $region4: #{tpu_custom_call.1} parent=1 // pred_region
      _
    $region5: #{tpu_custom_call.1} parent=1 // pred_fallthru
      _
    // Predicated region
    $region6: #{tpu_custom_call.1} parent=1 // pred_check
      _
    $region7: #{tpu_custom_call.1} parent=1 // pred_check_branch
      %14 = sbr.rel (0) target = $region9
    $region8: #{tpu_custom_call.1} parent=1 // pred_region
      _
    $region9: #{tpu_custom_call.1} parent=1 // pred_fallthru
      _
    %v15 = vld [vmem:[%s0] sm:$0xff]
    %v16 = vld [vmem:[%s0 + $0x8] sm:$0xff]
    %v17 = vld [vmem:[%s0 + $0x10] sm:$0xff]
    %v18 = vld [vmem:[%s0 + $0x18] sm:$0xff]
    %v19 = vld [vmem:[%s0 + $0x20] sm:$0xff]
    %v20 = vld [vmem:[%s0 + $0x28] sm:$0xff]
    %v21 = vld [vmem:[%s0 + $0x30] sm:$0xff]
    %v22 = vld [vmem:[%s0 + $0x38] sm:$0xff]
    %v23 = vld [vmem:[%s0 + $0x40] sm:$0xff]
    %v24 = vld [vmem:[%s0 + $0x48] sm:$0xff]
    %v25 = vld [vmem:[%s0 + $0x50] sm:$0xff]
    %v26 = vld [vmem:[%s0 + $0x58] sm:$0xff]
    %v27 = vld [vmem:[%s0 + $0x60] sm:$0xff]
    %v28 = vld [vmem:[%s0 + $0x68] sm:$0xff]
    %v29 = vld [vmem:[%s0 + $0x70] sm:$0xff]
    %v30 = vld [vmem:[%s0 + $0x78] sm:$0xff]
    %v31 = vld [vmem:[%s1] sm:$0xff]
    %vm32 = vcmask 64512
    %v34 = vsel %vm32, %v15, 0
    %v37 = vsel %vm32, %v16, 0
    %v40 = vsel %vm32, %v17, 0
    %v43 = vsel %vm32, %v18, 0
    %v46 = vsel %vm32, %v19, 0
    %v49 = vsel %vm32, %v20, 0
    %v52 = vsel %vm32, %v21, 0
    %v55 = vsel %vm32, %v22, 0
    %v58 = vsel %vm32, %v23, 0
    %v61 = vsel %vm32, %v24, 0
    %v64 = vsel %vm32, %v25, 0
    %v67 = vsel %vm32, %v26, 0
    %v70 = vsel %vm32, %v27, 0
    %v73 = vsel %vm32, %v28, 0
    %v76 = vsel %vm32, %v29, 0
    %v79 = vsel %vm32, %v30, 0
    %81 = vmatprep.subr.mxu0 0.0
    %v82 = vand.u32 %v31, 4294901760
    %83 = vmatpush1.msra.mxu0 %v82
    %84 = vmatprep.subr.mxu0 0.0
    %85 = vmatpush1.msra.mxu0 0.0
    %86 = vmatprep.subr.mxu0 0.0
    %87 = vmatpush1.msra.mxu0 0.0
    %88 = vmatprep.subr.mxu0 0.0
    %89 = vmatpush1.msra.mxu0 0.0
    %90 = vmatprep.subr.mxu0 0.0
    %91 = vmatpush1.msra.mxu0 0.0
    %92 = vmatprep.subr.mxu0 0.0
    %93 = vmatpush1.msra.mxu0 0.0
    %94 = vmatprep.subr.mxu0 0.0
    %95 = vmatpush1.msra.mxu0 0.0
    %96 = vmatprep.subr.mxu0 0.0
    %97 = vmatpush1.msra.mxu0 0.0
    %98 = vmatprep.subr.mxu0 0.0
    %99 = vmatpush1.msra.mxu0 0.0
    %100 = vmatprep.subr.mxu0 0.0
    %101 = vmatpush1.msra.mxu0 0.0
    %102 = vmatprep.subr.mxu0 0.0
    %103 = vmatpush1.msra.mxu0 0.0
    %104 = vmatprep.subr.mxu0 0.0
    %105 = vmatpush1.msra.mxu0 0.0
    %106 = vmatprep.subr.mxu0 0.0
    %107 = vmatpush1.msra.mxu0 0.0
    %108 = vmatprep.subr.mxu0 0.0
    %109 = vmatpush1.msra.mxu0 0.0
    %110 = vmatprep.subr.mxu0 0.0
    %111 = vmatpush1.msra.mxu0 0.0
    %112 = vmatprep.subr.mxu0 0.0
    %113 = vmatpush1.msra.mxu0 0.0
    %114 = vmatprep.subr.mxu0 0.0
    %115 = vmatpush1.msra.mxu0 0.0
    %116 = vmatprep.subr.mxu0 0.0
    %117 = vmatpush1.msra.mxu0 0.0
    %118 = vmatprep.subr.mxu0 0.0
    %119 = vmatpush1.msra.mxu0 0.0
    %120 = vmatprep.subr.mxu0 0.0
    %121 = vmatpush1.msra.mxu0 0.0
    %122 = vmatprep.subr.mxu0 0.0
    %123 = vmatpush1.msra.mxu0 0.0
    %124 = vmatprep.subr.mxu0 0.0
    %125 = vmatpush1.msra.mxu0 0.0
    %126 = vmatprep.subr.mxu0 0.0
    %127 = vmatpush1.msra.mxu0 0.0
    %128 = vmatprep.subr.mxu0 0.0
    %129 = vmatpush1.msra.mxu0 0.0
    %130 = vmatprep.subr.mxu0 0.0
    %131 = vmatpush1.msra.mxu0 0.0
    %132 = vmatprep.subr.mxu0 0.0
    %133 = vmatpush1.msra.mxu0 0.0
    %134 = vmatprep.subr.mxu0 0.0
    %135 = vmatpush1.msra.mxu0 0.0
    %136 = vmatprep.subr.mxu0 0.0
    %137 = vmatpush1.msra.mxu0 0.0
    %138 = vmatprep.subr.mxu0 0.0
    %139 = vmatpush1.msra.mxu0 0.0
    %140 = vmatprep.subr.mxu0 0.0
    %141 = vmatpush1.msra.mxu0 0.0
    %142 = vmatprep.subr.mxu0 0.0
    %143 = vmatpush1.msra.mxu0 0.0
    %144 = vmatprep.subr.mxu0 0.0
    %145 = vmatpush1.msra.mxu0 0.0
    %146 = vmatprep.mubr.f32.mxu0 0.0
    %v147 = vand.u32 %v34, 4294901760
    %v148 = vsub.f32 %v34, %v147
    %v149 = vand.u32 %v148, 4294901760
    %v150 = vsub.f32 %v148, %v149
    %v151 = vand.u32 %v150, 4294901760
    %152 = vmatmul.mubr.f32.gmra.mrb[0].mxu0 %v151
    %v153 = vpop.f32.mrb[0].mxu0
    %v154 = vadd.f32 0.0, %v153
    %v155 = vpop.f32.mrb[0].mxu0
    %156 = vmatprep.mubr.f32.mxu0 0.0
    %v157 = vand.u32 %v37, 4294901760
    %v158 = vsub.f32 %v37, %v157
    %v159 = vand.u32 %v158, 4294901760
    %v160 = vsub.f32 %v158, %v159
    %v161 = vand.u32 %v160, 4294901760
    %162 = vmatmul.mubr.f32.gmra.mrb[0].mxu0 %v161
    %v163 = vpop.f32.mrb[0].mxu0
    %v164 = vadd.f32 0.0, %v163
    %v165 = vpop.f32.mrb[0].mxu0
    %166 = vmatprep.mubr.f32.mxu0 0.0
    %v167 = vand.u32 %v40, 4294901760
    %v168 = vsub.f32 %v40, %v167
    %v169 = vand.u32 %v168, 4294901760
    %v170 = vsub.f32 %v168, %v169
    %v171 = vand.u32 %v170, 4294901760
    %172 = vmatmul.mubr.f32.gmra.mrb[0].mxu0 %v171
    %v173 = vpop.f32.mrb[0].mxu0
    %v174 = vadd.f32 0.0, %v173
    %v175 = vpop.f32.mrb[0].mxu0
    %176 = vmatprep.mubr.f32.mxu0 0.0
    %v177 = vand.u32 %v43, 4294901760
    %v178 = vsub.f32 %v43, %v177
    %v179 = vand.u32 %v178, 4294901760
    %v180 = vsub.f32 %v178, %v179
    %v181 = vand.u32 %v180, 4294901760
    %182 = vmatmul.mubr.f32.gmra.mrb[0].mxu0 %v181
    %v183 = vpop.f32.mrb[0].mxu0
    %v184 = vadd.f32 0.0, %v183
    %v185 = vpop.f32.mrb[0].mxu0
    %186 = vmatprep.mubr.f32.mxu0 0.0
    %v187 = vand.u32 %v46, 4294901760
    %v188 = vsub.f32 %v46, %v187
    %v189 = vand.u32 %v188, 4294901760
    %v190 = vsub.f32 %v188, %v189
    %v191 = vand.u32 %v190, 4294901760
    %192 = vmatmul.mubr.f32.gmra.mrb[0].mxu0 %v191
    %v193 = vpop.f32.mrb[0].mxu0
    %v194 = vadd.f32 0.0, %v193
    %v195 = vpop.f32.mrb[0].mxu0
    %196 = vmatprep.mubr.f32.mxu0 0.0
    %v197 = vand.u32 %v49, 4294901760
    %v198 = vsub.f32 %v49, %v197
    %v199 = vand.u32 %v198, 4294901760
    %v200 = vsub.f32 %v198, %v199
    %v201 = vand.u32 %v200, 4294901760
    %202 = vmatmul.mubr.f32.gmra.mrb[0].mxu0 %v201
    %v203 = vpop.f32.mrb[0].mxu0
    %v204 = vadd.f32 0.0, %v203
    %v205 = vpop.f32.mrb[0].mxu0
    %206 = vmatprep.mubr.f32.mxu0 0.0
    %v207 = vand.u32 %v52, 4294901760
    %v208 = vsub.f32 %v52, %v207
    %v209 = vand.u32 %v208, 4294901760
    %v210 = vsub.f32 %v208, %v209
    %v211 = vand.u32 %v210, 4294901760
    %212 = vmatmul.mubr.f32.gmra.mrb[0].mxu0 %v211
    %v213 = vpop.f32.mrb[0].mxu0
    %v214 = vadd.f32 0.0, %v213
    %v215 = vpop.f32.mrb[0].mxu0
    %216 = vmatprep.mubr.f32.mxu0 0.0
    %v217 = vand.u32 %v55, 4294901760
    %v218 = vsub.f32 %v55, %v217
    %v219 = vand.u32 %v218, 4294901760
    %v220 = vsub.f32 %v218, %v219
    %v221 = vand.u32 %v220, 4294901760
    %222 = vmatmul.mubr.f32.gmra.mrb[0].mxu0 %v221
    %v223 = vpop.f32.mrb[0].mxu0
    %v224 = vadd.f32 0.0, %v223
    %v225 = vpop.f32.mrb[0].mxu0
    %226 = vmatprep.mubr.f32.mxu0 0.0
    %v227 = vand.u32 %v58, 4294901760
    %v228 = vsub.f32 %v58, %v227
    %v229 = vand.u32 %v228, 4294901760
    %v230 = vsub.f32 %v228, %v229
    %v231 = vand.u32 %v230, 4294901760
    %232 = vmatmul.mubr.f32.gmra.mrb[0].mxu0 %v231
    %v233 = vpop.f32.mrb[0].mxu0
    %v234 = vadd.f32 0.0, %v233
    %v235 = vpop.f32.mrb[0].mxu0
    %236 = vmatprep.mubr.f32.mxu0 0.0
    %v237 = vand.u32 %v61, 4294901760
    %v238 = vsub.f32 %v61, %v237
    %v239 = vand.u32 %v238, 4294901760
    %v240 = vsub.f32 %v238, %v239
    %v241 = vand.u32 %v240, 4294901760
    %242 = vmatmul.mubr.f32.gmra.mrb[0].mxu0 %v241
    %v243 = vpop.f32.mrb[0].mxu0
    %v244 = vadd.f32 0.0, %v243
    %v245 = vpop.f32.mrb[0].mxu0
    %246 = vmatprep.mubr.f32.mxu0 0.0
    %v247 = vand.u32 %v64, 4294901760
    %v248 = vsub.f32 %v64, %v247
    %v249 = vand.u32 %v248, 4294901760
    %v250 = vsub.f32 %v248, %v249
    %v251 = vand.u32 %v250, 4294901760
    %252 = vmatmul.mubr.f32.gmra.mrb[0].mxu0 %v251
    %v253 = vpop.f32.mrb[0].mxu0
    %v254 = vadd.f32 0.0, %v253
    %v255 = vpop.f32.mrb[0].mxu0
    %256 = vmatprep.mubr.f32.mxu0 0.0
    %v257 = vand.u32 %v67, 4294901760
    %v258 = vsub.f32 %v67, %v257
    %v259 = vand.u32 %v258, 4294901760
    %v260 = vsub.f32 %v258, %v259
    %v261 = vand.u32 %v260, 4294901760
    %262 = vmatmul.mubr.f32.gmra.mrb[0].mxu0 %v261
    %v263 = vpop.f32.mrb[0].mxu0
    %v264 = vadd.f32 0.0, %v263
    %v265 = vpop.f32.mrb[0].mxu0
    %266 = vmatprep.mubr.f32.mxu0 0.0
    %v267 = vand.u32 %v70, 4294901760
    %v268 = vsub.f32 %v70, %v267
    %v269 = vand.u32 %v268, 4294901760
    %v270 = vsub.f32 %v268, %v269
    %v271 = vand.u32 %v270, 4294901760
    %272 = vmatmul.mubr.f32.gmra.mrb[0].mxu0 %v271
    %v273 = vpop.f32.mrb[0].mxu0
    %v274 = vadd.f32 0.0, %v273
    %v275 = vpop.f32.mrb[0].mxu0
    %276 = vmatprep.mubr.f32.mxu0 0.0
    %v277 = vand.u32 %v73, 4294901760
    %v278 = vsub.f32 %v73, %v277
    %v279 = vand.u32 %v278, 4294901760
    %v280 = vsub.f32 %v278, %v279
    %v281 = vand.u32 %v280, 4294901760
    %282 = vmatmul.mubr.f32.gmra.mrb[0].mxu0 %v281
    %v283 = vpop.f32.mrb[0].mxu0
    %v284 = vadd.f32 0.0, %v283
    %v285 = vpop.f32.mrb[0].mxu0
    %286 = vmatprep.mubr.f32.mxu0 0.0
    %v287 = vand.u32 %v76, 4294901760
    %v288 = vsub.f32 %v76, %v287
    %v289 = vand.u32 %v288, 4294901760
    %v290 = vsub.f32 %v288, %v289
    %v291 = vand.u32 %v290, 4294901760
    %292 = vmatmul.mubr.f32.gmra.mrb[0].mxu0 %v291
    %v293 = vpop.f32.mrb[0].mxu0
    %v294 = vadd.f32 0.0, %v293
    %v295 = vpop.f32.mrb[0].mxu0
    %296 = vmatprep.mubr.f32.mxu0 0.0
    %v297 = vand.u32 %v79, 4294901760
    %v298 = vsub.f32 %v79, %v297
    %v299 = vand.u32 %v298, 4294901760
    %v300 = vsub.f32 %v298, %v299
    %v301 = vand.u32 %v300, 4294901760
    %302 = vmatmul.mubr.f32.gmra.mrb[0].mxu0 %v301
    %v303 = vpop.f32.mrb[0].mxu0
    %v304 = vadd.f32 0.0, %v303
    %v305 = vpop.f32.mrb[0].mxu0
    %306 = vdwg.mxu0
    %307 = vmatprep.subr.mxu0 0.0
    %v308 = vand.u32 %v31, 4294901760
    %v309 = vsub.f32 %v31, %v308
    %v310 = vand.u32 %v309, 4294901760
    %v311 = vsub.f32 %v309, %v310
    %v312 = vand.u32 %v311, 4294901760
    %313 = vmatpush1.msra.mxu0 %v312
    %314 = vmatprep.subr.mxu0 0.0
    %315 = vmatpush1.msra.mxu0 0.0
    %316 = vmatprep.subr.mxu0 0.0
    %317 = vmatpush1.msra.mxu0 0.0
    %318 = vmatprep.subr.mxu0 0.0
    %319 = vmatpush1.msra.mxu0 0.0
    %320 = vmatprep.subr.mxu0 0.0
    %321 = vmatpush1.msra.mxu0 0.0
    %322 = vmatprep.subr.mxu0 0.0
    %323 = vmatpush1.msra.mxu0 0.0
    %324 = vmatprep.subr.mxu0 0.0
    %325 = vmatpush1.msra.mxu0 0.0
    %326 = vmatprep.subr.mxu0 0.0
    %327 = vmatpush1.msra.mxu0 0.0
    %328 = vmatprep.subr.mxu0 0.0
    %329 = vmatpush1.msra.mxu0 0.0
    %330 = vmatprep.subr.mxu0 0.0
    %331 = vmatpush1.msra.mxu0 0.0
    %332 = vmatprep.subr.mxu0 0.0
    %333 = vmatpush1.msra.mxu0 0.0
    %334 = vmatprep.subr.mxu0 0.0
    %335 = vmatpush1.msra.mxu0 0.0
    %336 = vmatprep.subr.mxu0 0.0
    %337 = vmatpush1.msra.mxu0 0.0
    %338 = vmatprep.subr.mxu0 0.0
    %339 = vmatpush1.msra.mxu0 0.0
    %340 = vmatprep.subr.mxu0 0.0
    %341 = vmatpush1.msra.mxu0 0.0
    %342 = vmatprep.subr.mxu0 0.0
    %343 = vmatpush1.msra.mxu0 0.0
    %344 = vmatprep.subr.mxu0 0.0
    %345 = vmatpush1.msra.mxu0 0.0
    %346 = vmatprep.subr.mxu0 0.0
    %347 = vmatpush1.msra.mxu0 0.0
    %348 = vmatprep.subr.mxu0 0.0
    %349 = vmatpush1.msra.mxu0 0.0
    %350 = vmatprep.subr.mxu0 0.0
    %351 = vmatpush1.msra.mxu0 0.0
    %352 = vmatprep.subr.mxu0 0.0
    %353 = vmatpush1.msra.mxu0 0.0
    %354 = vmatprep.subr.mxu0 0.0
    %355 = vmatpush1.msra.mxu0 0.0
    %356 = vmatprep.subr.mxu0 0.0
    %357 = vmatpush1.msra.mxu0 0.0
    %358 = vmatprep.subr.mxu0 0.0
    %359 = vmatpush1.msra.mxu0 0.0
    %360 = vmatprep.subr.mxu0 0.0
    %361 = vmatpush1.msra.mxu0 0.0
    %362 = vmatprep.subr.mxu0 0.0
    %363 = vmatpush1.msra.mxu0 0.0
    %364 = vmatprep.subr.mxu0 0.0
    %365 = vmatpush1.msra.mxu0 0.0
    %366 = vmatprep.subr.mxu0 0.0
    %367 = vmatpush1.msra.mxu0 0.0
    %368 = vmatprep.subr.mxu0 0.0
    %369 = vmatpush1.msra.mxu0 0.0
    %370 = vmatprep.subr.mxu0 0.0
    %371 = vmatpush1.msra.mxu0 0.0
    %372 = vmatprep.subr.mxu0 0.0
    %373 = vmatpush1.msra.mxu0 0.0
    %374 = vmatprep.subr.mxu0 0.0
    %375 = vmatpush1.msra.mxu0 0.0
    %376 = vmatprep.mubr.f32.mxu0 0.0
    %v377 = vand.u32 %v34, 4294901760
    %378 = vmatmul.mubr.f32.gmra.mrb[0].mxu0 %v377
    %v379 = vpop.f32.mrb[0].mxu0
    %v380 = vadd.f32 %v154, %v379
    %v381 = vpop.f32.mrb[0].mxu0
    %382 = vmatprep.mubr.f32.mxu0 0.0
    %v383 = vand.u32 %v37, 4294901760
    %384 = vmatmul.mubr.f32.gmra.mrb[0].mxu0 %v383
    %v385 = vpop.f32.mrb[0].mxu0
    %v386 = vadd.f32 %v164, %v385
    %v387 = vpop.f32.mrb[0].mxu0
    %388 = vmatprep.mubr.f32.mxu0 0.0
    %v389 = vand.u32 %v40, 4294901760
    %390 = vmatmul.mubr.f32.gmra.mrb[0].mxu0 %v389
    %v391 = vpop.f32.mrb[0].mxu0
    %v392 = vadd.f32 %v174, %v391
    %v393 = vpop.f32.mrb[0].mxu0
    %394 = vmatprep.mubr.f32.mxu0 0.0
    %v395 = vand.u32 %v43, 4294901760
    %396 = vmatmul.mubr.f32.gmra.mrb[0].mxu0 %v395
    %v397 = vpop.f32.mrb[0].mxu0
    %v398 = vadd.f32 %v184, %v397
    %v399 = vpop.f32.mrb[0].mxu0
    %400 = vmatprep.mubr.f32.mxu0 0.0
    %v401 = vand.u32 %v46, 4294901760
    %402 = vmatmul.mubr.f32.gmra.mrb[0].mxu0 %v401
    %v403 = vpop.f32.mrb[0].mxu0
    %v404 = vadd.f32 %v194, %v403
    %v405 = vpop.f32.mrb[0].mxu0
    %406 = vmatprep.mubr.f32.mxu0 0.0
    %v407 = vand.u32 %v49, 4294901760
    %408 = vmatmul.mubr.f32.gmra.mrb[0].mxu0 %v407
    %v409 = vpop.f32.mrb[0].mxu0
    %v410 = vadd.f32 %v204, %v409
    %v411 = vpop.f32.mrb[0].mxu0
    %412 = vmatprep.mubr.f32.mxu0 0.0
    %v413 = vand.u32 %v52, 4294901760
    %414 = vmatmul.mubr.f32.gmra.mrb[0].mxu0 %v413
    %v415 = vpop.f32.mrb[0].mxu0
    %v416 = vadd.f32 %v214, %v415
    %v417 = vpop.f32.mrb[0].mxu0
    %418 = vmatprep.mubr.f32.mxu0 0.0
    %v419 = vand.u32 %v55, 4294901760
    %420 = vmatmul.mubr.f32.gmra.mrb[0].mxu0 %v419
    %v421 = vpop.f32.mrb[0].mxu0
    %v422 = vadd.f32 %v224, %v421
    %v423 = vpop.f32.mrb[0].mxu0
    %424 = vmatprep.mubr.f32.mxu0 0.0
    %v425 = vand.u32 %v58, 4294901760
    %426 = vmatmul.mubr.f32.gmra.mrb[0].mxu0 %v425
    %v427 = vpop.f32.mrb[0].mxu0
    %v428 = vadd.f32 %v234, %v427
    %v429 = vpop.f32.mrb[0].mxu0
    %430 = vmatprep.mubr.f32.mxu0 0.0
    %v431 = vand.u32 %v61, 4294901760
    %432 = vmatmul.mubr.f32.gmra.mrb[0].mxu0 %v431
    %v433 = vpop.f32.mrb[0].mxu0
    %v434 = vadd.f32 %v244, %v433
    %v435 = vpop.f32.mrb[0].mxu0
    %436 = vmatprep.mubr.f32.mxu0 0.0
    %v437 = vand.u32 %v64, 4294901760
    %438 = vmatmul.mubr.f32.gmra.mrb[0].mxu0 %v437
    %v439 = vpop.f32.mrb[0].mxu0
    %v440 = vadd.f32 %v254, %v439
    %v441 = vpop.f32.mrb[0].mxu0
    %442 = vmatprep.mubr.f32.mxu0 0.0
    %v443 = vand.u32 %v67, 4294901760
    %444 = vmatmul.mubr.f32.gmra.mrb[0].mxu0 %v443
    %v445 = vpop.f32.mrb[0].mxu0
    %v446 = vadd.f32 %v264, %v445
    %v447 = vpop.f32.mrb[0].mxu0
    %448 = vmatprep.mubr.f32.mxu0 0.0
    %v449 = vand.u32 %v70, 4294901760
    %450 = vmatmul.mubr.f32.gmra.mrb[0].mxu0 %v449
    %v451 = vpop.f32.mrb[0].mxu0
    %v452 = vadd.f32 %v274, %v451
    %v453 = vpop.f32.mrb[0].mxu0
    %454 = vmatprep.mubr.f32.mxu0 0.0
    %v455 = vand.u32 %v73, 4294901760
    %456 = vmatmul.mubr.f32.gmra.mrb[0].mxu0 %v455
    %v457 = vpop.f32.mrb[0].mxu0
    %v458 = vadd.f32 %v284, %v457
    %v459 = vpop.f32.mrb[0].mxu0
    %460 = vmatprep.mubr.f32.mxu0 0.0
    %v461 = vand.u32 %v76, 4294901760
    %462 = vmatmul.mubr.f32.gmra.mrb[0].mxu0 %v461
    %v463 = vpop.f32.mrb[0].mxu0
    %v464 = vadd.f32 %v294, %v463
    %v465 = vpop.f32.mrb[0].mxu0
    %466 = vmatprep.mubr.f32.mxu0 0.0
    %v467 = vand.u32 %v79, 4294901760
    %468 = vmatmul.mubr.f32.gmra.mrb[0].mxu0 %v467
    %v469 = vpop.f32.mrb[0].mxu0
    %v470 = vadd.f32 %v304, %v469
    %v471 = vpop.f32.mrb[0].mxu0
    %472 = vdwg.mxu0
    %473 = vmatprep.subr.mxu0 0.0
    %v474 = vand.u32 %v31, 4294901760
    %v475 = vsub.f32 %v31, %v474
    %476 = vmatpush1.msra.mxu0 %v475
    %477 = vmatprep.subr.mxu0 0.0
    %478 = vmatpush1.msra.mxu0 0.0
    %479 = vmatprep.subr.mxu0 0.0
    %480 = vmatpush1.msra.mxu0 0.0
    %481 = vmatprep.subr.mxu0 0.0
    %482 = vmatpush1.msra.mxu0 0.0
    %483 = vmatprep.subr.mxu0 0.0
    %484 = vmatpush1.msra.mxu0 0.0
    %485 = vmatprep.subr.mxu0 0.0
    %486 = vmatpush1.msra.mxu0 0.0
    %487 = vmatprep.subr.mxu0 0.0
    %488 = vmatpush1.msra.mxu0 0.0
    %489 = vmatprep.subr.mxu0 0.0
    %490 = vmatpush1.msra.mxu0 0.0
    %491 = vmatprep.subr.mxu0 0.0
    %492 = vmatpush1.msra.mxu0 0.0
    %493 = vmatprep.subr.mxu0 0.0
    %494 = vmatpush1.msra.mxu0 0.0
    %495 = vmatprep.subr.mxu0 0.0
    %496 = vmatpush1.msra.mxu0 0.0
    %497 = vmatprep.subr.mxu0 0.0
    %498 = vmatpush1.msra.mxu0 0.0
    %499 = vmatprep.subr.mxu0 0.0
    %500 = vmatpush1.msra.mxu0 0.0
    %501 = vmatprep.subr.mxu0 0.0
    %502 = vmatpush1.msra.mxu0 0.0
    %503 = vmatprep.subr.mxu0 0.0
    %504 = vmatpush1.msra.mxu0 0.0
    %505 = vmatprep.subr.mxu0 0.0
    %506 = vmatpush1.msra.mxu0 0.0
    %507 = vmatprep.subr.mxu0 0.0
    %508 = vmatpush1.msra.mxu0 0.0
    %509 = vmatprep.subr.mxu0 0.0
    %510 = vmatpush1.msra.mxu0 0.0
    %511 = vmatprep.subr.mxu0 0.0
    %512 = vmatpush1.msra.mxu0 0.0
    %513 = vmatprep.subr.mxu0 0.0
    %514 = vmatpush1.msra.mxu0 0.0
    %515 = vmatprep.subr.mxu0 0.0
    %516 = vmatpush1.msra.mxu0 0.0
    %517 = vmatprep.subr.mxu0 0.0
    %518 = vmatpush1.msra.mxu0 0.0
    %519 = vmatprep.subr.mxu0 0.0
    %520 = vmatpush1.msra.mxu0 0.0
    %521 = vmatprep.subr.mxu0 0.0
    %522 = vmatpush1.msra.mxu0 0.0
    %523 = vmatprep.subr.mxu0 0.0
    %524 = vmatpush1.msra.mxu0 0.0
    %525 = vmatprep.subr.mxu0 0.0
    %526 = vmatpush1.msra.mxu0 0.0
    %527 = vmatprep.subr.mxu0 0.0
    %528 = vmatpush1.msra.mxu0 0.0
    %529 = vmatprep.subr.mxu0 0.0
    %530 = vmatpush1.msra.mxu0 0.0
    %531 = vmatprep.subr.mxu0 0.0
    %532 = vmatpush1.msra.mxu0 0.0
    %533 = vmatprep.subr.mxu0 0.0
    %534 = vmatpush1.msra.mxu0 0.0
    %535 = vmatprep.subr.mxu0 0.0
    %536 = vmatpush1.msra.mxu0 0.0
    %537 = vmatprep.subr.mxu0 0.0
    %538 = vmatpush1.msra.mxu0 0.0
    %539 = vmatprep.mubr.f32.mxu0 0.0
    %v540 = vand.u32 %v34, 4294901760
    %v541 = vsub.f32 %v34, %v540
    %542 = vmatmul.mubr.f32.gmra.mrb[0].mxu0 %v541
    %v543 = vpop.f32.mrb[0].mxu0
    %v544 = vadd.f32 %v380, %v543
    %v545 = vpop.f32.mrb[0].mxu0
    %546 = vmatprep.mubr.f32.mxu0 0.0
    %v547 = vand.u32 %v37, 4294901760
    %v548 = vsub.f32 %v37, %v547
    %549 = vmatmul.mubr.f32.gmra.mrb[0].mxu0 %v548
    %v550 = vpop.f32.mrb[0].mxu0
    %v551 = vadd.f32 %v386, %v550
    %v552 = vpop.f32.mrb[0].mxu0
    %553 = vmatprep.mubr.f32.mxu0 0.0
    %v554 = vand.u32 %v40, 4294901760
    %v555 = vsub.f32 %v40, %v554
    %556 = vmatmul.mubr.f32.gmra.mrb[0].mxu0 %v555
    %v557 = vpop.f32.mrb[0].mxu0
    %v558 = vadd.f32 %v392, %v557
    %v559 = vpop.f32.mrb[0].mxu0
    %560 = vmatprep.mubr.f32.mxu0 0.0
    %v561 = vand.u32 %v43, 4294901760
    %v562 = vsub.f32 %v43, %v561
    %563 = vmatmul.mubr.f32.gmra.mrb[0].mxu0 %v562
    %v564 = vpop.f32.mrb[0].mxu0
    %v565 = vadd.f32 %v398, %v564
    %v566 = vpop.f32.mrb[0].mxu0
    %567 = vmatprep.mubr.f32.mxu0 0.0
    %v568 = vand.u32 %v46, 4294901760
    %v569 = vsub.f32 %v46, %v568
    %570 = vmatmul.mubr.f32.gmra.mrb[0].mxu0 %v569
    %v571 = vpop.f32.mrb[0].mxu0
    %v572 = vadd.f32 %v404, %v571
    %v573 = vpop.f32.mrb[0].mxu0
    %574 = vmatprep.mubr.f32.mxu0 0.0
    %v575 = vand.u32 %v49, 4294901760
    %v576 = vsub.f32 %v49, %v575
    %577 = vmatmul.mubr.f32.gmra.mrb[0].mxu0 %v576
    %v578 = vpop.f32.mrb[0].mxu0
    %v579 = vadd.f32 %v410, %v578
    %v580 = vpop.f32.mrb[0].mxu0
    %581 = vmatprep.mubr.f32.mxu0 0.0
    %v582 = vand.u32 %v52, 4294901760
    %v583 = vsub.f32 %v52, %v582
    %584 = vmatmul.mubr.f32.gmra.mrb[0].mxu0 %v583
    %v585 = vpop.f32.mrb[0].mxu0
    %v586 = vadd.f32 %v416, %v585
    %v587 = vpop.f32.mrb[0].mxu0
    %588 = vmatprep.mubr.f32.mxu0 0.0
    %v589 = vand.u32 %v55, 4294901760
    %v590 = vsub.f32 %v55, %v589
    %591 = vmatmul.mubr.f32.gmra.mrb[0].mxu0 %v590
    %v592 = vpop.f32.mrb[0].mxu0
    %v593 = vadd.f32 %v422, %v592
    %v594 = vpop.f32.mrb[0].mxu0
    %595 = vmatprep.mubr.f32.mxu0 0.0
    %v596 = vand.u32 %v58, 4294901760
    %v597 = vsub.f32 %v58, %v596
    %598 = vmatmul.mubr.f32.gmra.mrb[0].mxu0 %v597
    %v599 = vpop.f32.mrb[0].mxu0
    %v600 = vadd.f32 %v428, %v599
    %v601 = vpop.f32.mrb[0].mxu0
    %602 = vmatprep.mubr.f32.mxu0 0.0
    %v603 = vand.u32 %v61, 4294901760
    %v604 = vsub.f32 %v61, %v603
    %605 = vmatmul.mubr.f32.gmra.mrb[0].mxu0 %v604
    %v606 = vpop.f32.mrb[0].mxu0
    %v607 = vadd.f32 %v434, %v606
    %v608 = vpop.f32.mrb[0].mxu0
    %609 = vmatprep.mubr.f32.mxu0 0.0
    %v610 = vand.u32 %v64, 4294901760
    %v611 = vsub.f32 %v64, %v610
    %612 = vmatmul.mubr.f32.gmra.mrb[0].mxu0 %v611
    %v613 = vpop.f32.mrb[0].mxu0
    %v614 = vadd.f32 %v440, %v613
    %v615 = vpop.f32.mrb[0].mxu0
    %616 = vmatprep.mubr.f32.mxu0 0.0
    %v617 = vand.u32 %v67, 4294901760
    %v618 = vsub.f32 %v67, %v617
    %619 = vmatmul.mubr.f32.gmra.mrb[0].mxu0 %v618
    %v620 = vpop.f32.mrb[0].mxu0
    %v621 = vadd.f32 %v446, %v620
    %v622 = vpop.f32.mrb[0].mxu0
    %623 = vmatprep.mubr.f32.mxu0 0.0
    %v624 = vand.u32 %v70, 4294901760
    %v625 = vsub.f32 %v70, %v624
    %626 = vmatmul.mubr.f32.gmra.mrb[0].mxu0 %v625
    %v627 = vpop.f32.mrb[0].mxu0
    %v628 = vadd.f32 %v452, %v627
    %v629 = vpop.f32.mrb[0].mxu0
    %630 = vmatprep.mubr.f32.mxu0 0.0
    %v631 = vand.u32 %v73, 4294901760
    %v632 = vsub.f32 %v73, %v631
    %633 = vmatmul.mubr.f32.gmra.mrb[0].mxu0 %v632
    %v634 = vpop.f32.mrb[0].mxu0
    %v635 = vadd.f32 %v458, %v634
    %v636 = vpop.f32.mrb[0].mxu0
    %637 = vmatprep.mubr.f32.mxu0 0.0
    %v638 = vand.u32 %v76, 4294901760
    %v639 = vsub.f32 %v76, %v638
    %640 = vmatmul.mubr.f32.gmra.mrb[0].mxu0 %v639
    %v641 = vpop.f32.mrb[0].mxu0
    %v642 = vadd.f32 %v464, %v641
    %v643 = vpop.f32.mrb[0].mxu0
    %644 = vmatprep.mubr.f32.mxu0 0.0
    %v645 = vand.u32 %v79, 4294901760
    %v646 = vsub.f32 %v79, %v645
    %647 = vmatmul.mubr.f32.gmra.mrb[0].mxu0 %v646
    %v648 = vpop.f32.mrb[0].mxu0
    %v649 = vadd.f32 %v470, %v648
    %v650 = vpop.f32.mrb[0].mxu0
    %651 = vdwg.mxu0
    %652 = vmatprep.subr.mxu0 0.0
    %v653 = vand.u32 %v31, 4294901760
    %654 = vmatpush1.msra.mxu0 %v653
    %655 = vmatprep.subr.mxu0 0.0
    %656 = vmatpush1.msra.mxu0 0.0
    %657 = vmatprep.subr.mxu0 0.0
    %658 = vmatpush1.msra.mxu0 0.0
    %659 = vmatprep.subr.mxu0 0.0
    %660 = vmatpush1.msra.mxu0 0.0
    %661 = vmatprep.subr.mxu0 0.0
    %662 = vmatpush1.msra.mxu0 0.0
    %663 = vmatprep.subr.mxu0 0.0
    %664 = vmatpush1.msra.mxu0 0.0
    %665 = vmatprep.subr.mxu0 0.0
    %666 = vmatpush1.msra.mxu0 0.0
    %667 = vmatprep.subr.mxu0 0.0
    %668 = vmatpush1.msra.mxu0 0.0
    %669 = vmatprep.subr.mxu0 0.0
    %670 = vmatpush1.msra.mxu0 0.0
    %671 = vmatprep.subr.mxu0 0.0
    %672 = vmatpush1.msra.mxu0 0.0
    %673 = vmatprep.subr.mxu0 0.0
    %674 = vmatpush1.msra.mxu0 0.0
    %675 = vmatprep.subr.mxu0 0.0
    %676 = vmatpush1.msra.mxu0 0.0
    %677 = vmatprep.subr.mxu0 0.0
    %678 = vmatpush1.msra.mxu0 0.0
    %679 = vmatprep.subr.mxu0 0.0
    %680 = vmatpush1.msra.mxu0 0.0
    %681 = vmatprep.subr.mxu0 0.0
    %682 = vmatpush1.msra.mxu0 0.0
    %683 = vmatprep.subr.mxu0 0.0
    %684 = vmatpush1.msra.mxu0 0.0
    %685 = vmatprep.subr.mxu0 0.0
    %686 = vmatpush1.msra.mxu0 0.0
    %687 = vmatprep.subr.mxu0 0.0
    %688 = vmatpush1.msra.mxu0 0.0
    %689 = vmatprep.subr.mxu0 0.0
    %690 = vmatpush1.msra.mxu0 0.0
    %691 = vmatprep.subr.mxu0 0.0
    %692 = vmatpush1.msra.mxu0 0.0
    %693 = vmatprep.subr.mxu0 0.0
    %694 = vmatpush1.msra.mxu0 0.0
    %695 = vmatprep.subr.mxu0 0.0
    %696 = vmatpush1.msra.mxu0 0.0
    %697 = vmatprep.subr.mxu0 0.0
    %698 = vmatpush1.msra.mxu0 0.0
    %699 = vmatprep.subr.mxu0 0.0
    %700 = vmatpush1.msra.mxu0 0.0
    %701 = vmatprep.subr.mxu0 0.0
    %702 = vmatpush1.msra.mxu0 0.0
    %703 = vmatprep.subr.mxu0 0.0
    %704 = vmatpush1.msra.mxu0 0.0
    %705 = vmatprep.subr.mxu0 0.0
    %706 = vmatpush1.msra.mxu0 0.0
    %707 = vmatprep.subr.mxu0 0.0
    %708 = vmatpush1.msra.mxu0 0.0
    %709 = vmatprep.subr.mxu0 0.0
    %710 = vmatpush1.msra.mxu0 0.0
    %711 = vmatprep.subr.mxu0 0.0
    %712 = vmatpush1.msra.mxu0 0.0
    %713 = vmatprep.subr.mxu0 0.0
    %714 = vmatpush1.msra.mxu0 0.0
    %715 = vmatprep.subr.mxu0 0.0
    %716 = vmatpush1.msra.mxu0 0.0
    %717 = vmatprep.mubr.f32.mxu0 0.0
    %v718 = vand.u32 %v34, 4294901760
    %v719 = vsub.f32 %v34, %v718
    %v720 = vand.u32 %v719, 4294901760
    %721 = vmatmul.mubr.f32.gmra.mrb[0].mxu0 %v720
    %v722 = vpop.f32.mrb[0].mxu0
    %v723 = vadd.f32 %v544, %v722
    %v724 = vpop.f32.mrb[0].mxu0
    %725 = vmatprep.mubr.f32.mxu0 0.0
    %v726 = vand.u32 %v37, 4294901760
    %v727 = vsub.f32 %v37, %v726
    %v728 = vand.u32 %v727, 4294901760
    %729 = vmatmul.mubr.f32.gmra.mrb[0].mxu0 %v728
    %v730 = vpop.f32.mrb[0].mxu0
    %v731 = vadd.f32 %v551, %v730
    %v732 = vpop.f32.mrb[0].mxu0
    %733 = vmatprep.mubr.f32.mxu0 0.0
    %v734 = vand.u32 %v40, 4294901760
    %v735 = vsub.f32 %v40, %v734
    %v736 = vand.u32 %v735, 4294901760
    %737 = vmatmul.mubr.f32.gmra.mrb[0].mxu0 %v736
    %v738 = vpop.f32.mrb[0].mxu0
    %v739 = vadd.f32 %v558, %v738
    %v740 = vpop.f32.mrb[0].mxu0
    %741 = vmatprep.mubr.f32.mxu0 0.0
    %v742 = vand.u32 %v43, 4294901760
    %v743 = vsub.f32 %v43, %v742
    %v744 = vand.u32 %v743, 4294901760
    %745 = vmatmul.mubr.f32.gmra.mrb[0].mxu0 %v744
    %v746 = vpop.f32.mrb[0].mxu0
    %v747 = vadd.f32 %v565, %v746
    %v748 = vpop.f32.mrb[0].mxu0
    %749 = vmatprep.mubr.f32.mxu0 0.0
    %v750 = vand.u32 %v46, 4294901760
    %v751 = vsub.f32 %v46, %v750
    %v752 = vand.u32 %v751, 4294901760
    %753 = vmatmul.mubr.f32.gmra.mrb[0].mxu0 %v752
    %v754 = vpop.f32.mrb[0].mxu0
    %v755 = vadd.f32 %v572, %v754
    %v756 = vpop.f32.mrb[0].mxu0
    %757 = vmatprep.mubr.f32.mxu0 0.0
    %v758 = vand.u32 %v49, 4294901760
    %v759 = vsub.f32 %v49, %v758
    %v760 = vand.u32 %v759, 4294901760
    %761 = vmatmul.mubr.f32.gmra.mrb[0].mxu0 %v760
    %v762 = vpop.f32.mrb[0].mxu0
    %v763 = vadd.f32 %v579, %v762
    %v764 = vpop.f32.mrb[0].mxu0
    %765 = vmatprep.mubr.f32.mxu0 0.0
    %v766 = vand.u32 %v52, 4294901760
    %v767 = vsub.f32 %v52, %v766
    %v768 = vand.u32 %v767, 4294901760
    %769 = vmatmul.mubr.f32.gmra.mrb[0].mxu0 %v768
    %v770 = vpop.f32.mrb[0].mxu0
    %v771 = vadd.f32 %v586, %v770
    %v772 = vpop.f32.mrb[0].mxu0
    %773 = vmatprep.mubr.f32.mxu0 0.0
    %v774 = vand.u32 %v55, 4294901760
    %v775 = vsub.f32 %v55, %v774
    %v776 = vand.u32 %v775, 4294901760
    %777 = vmatmul.mubr.f32.gmra.mrb[0].mxu0 %v776
    %v778 = vpop.f32.mrb[0].mxu0
    %v779 = vadd.f32 %v593, %v778
    %v780 = vpop.f32.mrb[0].mxu0
    %781 = vmatprep.mubr.f32.mxu0 0.0
    %v782 = vand.u32 %v58, 4294901760
    %v783 = vsub.f32 %v58, %v782
    %v784 = vand.u32 %v783, 4294901760
    %785 = vmatmul.mubr.f32.gmra.mrb[0].mxu0 %v784
    %v786 = vpop.f32.mrb[0].mxu0
    %v787 = vadd.f32 %v600, %v786
    %v788 = vpop.f32.mrb[0].mxu0
    %789 = vmatprep.mubr.f32.mxu0 0.0
    %v790 = vand.u32 %v61, 4294901760
    %v791 = vsub.f32 %v61, %v790
    %v792 = vand.u32 %v791, 4294901760
    %793 = vmatmul.mubr.f32.gmra.mrb[0].mxu0 %v792
    %v794 = vpop.f32.mrb[0].mxu0
    %v795 = vadd.f32 %v607, %v794
    %v796 = vpop.f32.mrb[0].mxu0
    %797 = vmatprep.mubr.f32.mxu0 0.0
    %v798 = vand.u32 %v64, 4294901760
    %v799 = vsub.f32 %v64, %v798
    %v800 = vand.u32 %v799, 4294901760
    %801 = vmatmul.mubr.f32.gmra.mrb[0].mxu0 %v800
    %v802 = vpop.f32.mrb[0].mxu0
    %v803 = vadd.f32 %v614, %v802
    %v804 = vpop.f32.mrb[0].mxu0
    %805 = vmatprep.mubr.f32.mxu0 0.0
    %v806 = vand.u32 %v67, 4294901760
    %v807 = vsub.f32 %v67, %v806
    %v808 = vand.u32 %v807, 4294901760
    %809 = vmatmul.mubr.f32.gmra.mrb[0].mxu0 %v808
    %v810 = vpop.f32.mrb[0].mxu0
    %v811 = vadd.f32 %v621, %v810
    %v812 = vpop.f32.mrb[0].mxu0
    %813 = vmatprep.mubr.f32.mxu0 0.0
    %v814 = vand.u32 %v70, 4294901760
    %v815 = vsub.f32 %v70, %v814
    %v816 = vand.u32 %v815, 4294901760
    %817 = vmatmul.mubr.f32.gmra.mrb[0].mxu0 %v816
    %v818 = vpop.f32.mrb[0].mxu0
    %v819 = vadd.f32 %v628, %v818
    %v820 = vpop.f32.mrb[0].mxu0
    %821 = vmatprep.mubr.f32.mxu0 0.0
    %v822 = vand.u32 %v73, 4294901760
    %v823 = vsub.f32 %v73, %v822
    %v824 = vand.u32 %v823, 4294901760
    %825 = vmatmul.mubr.f32.gmra.mrb[0].mxu0 %v824
    %v826 = vpop.f32.mrb[0].mxu0
    %v827 = vadd.f32 %v635, %v826
    %v828 = vpop.f32.mrb[0].mxu0
    %829 = vmatprep.mubr.f32.mxu0 0.0
    %v830 = vand.u32 %v76, 4294901760
    %v831 = vsub.f32 %v76, %v830
    %v832 = vand.u32 %v831, 4294901760
    %833 = vmatmul.mubr.f32.gmra.mrb[0].mxu0 %v832
    %v834 = vpop.f32.mrb[0].mxu0
    %v835 = vadd.f32 %v642, %v834
    %v836 = vpop.f32.mrb[0].mxu0
    %837 = vmatprep.mubr.f32.mxu0 0.0
    %v838 = vand.u32 %v79, 4294901760
    %v839 = vsub.f32 %v79, %v838
    %v840 = vand.u32 %v839, 4294901760
    %841 = vmatmul.mubr.f32.gmra.mrb[0].mxu0 %v840
    %v842 = vpop.f32.mrb[0].mxu0
    %v843 = vadd.f32 %v649, %v842
    %v844 = vpop.f32.mrb[0].mxu0
    %845 = vdwg.mxu0
    %846 = vmatprep.subr.mxu0 0.0
    %v847 = vand.u32 %v31, 4294901760
    %v848 = vsub.f32 %v31, %v847
    %v849 = vand.u32 %v848, 4294901760
    %850 = vmatpush1.msra.mxu0 %v849
    %851 = vmatprep.subr.mxu0 0.0
    %852 = vmatpush1.msra.mxu0 0.0
    %853 = vmatprep.subr.mxu0 0.0
    %854 = vmatpush1.msra.mxu0 0.0
    %855 = vmatprep.subr.mxu0 0.0
    %856 = vmatpush1.msra.mxu0 0.0
    %857 = vmatprep.subr.mxu0 0.0
    %858 = vmatpush1.msra.mxu0 0.0
    %859 = vmatprep.subr.mxu0 0.0
    %860 = vmatpush1.msra.mxu0 0.0
    %861 = vmatprep.subr.mxu0 0.0
    %862 = vmatpush1.msra.mxu0 0.0
    %863 = vmatprep.subr.mxu0 0.0
    %864 = vmatpush1.msra.mxu0 0.0
    %865 = vmatprep.subr.mxu0 0.0
    %866 = vmatpush1.msra.mxu0 0.0
    %867 = vmatprep.subr.mxu0 0.0
    %868 = vmatpush1.msra.mxu0 0.0
    %869 = vmatprep.subr.mxu0 0.0
    %870 = vmatpush1.msra.mxu0 0.0
    %871 = vmatprep.subr.mxu0 0.0
    %872 = vmatpush1.msra.mxu0 0.0
    %873 = vmatprep.subr.mxu0 0.0
    %874 = vmatpush1.msra.mxu0 0.0
    %875 = vmatprep.subr.mxu0 0.0
    %876 = vmatpush1.msra.mxu0 0.0
    %877 = vmatprep.subr.mxu0 0.0
    %878 = vmatpush1.msra.mxu0 0.0
    %879 = vmatprep.subr.mxu0 0.0
    %880 = vmatpush1.msra.mxu0 0.0
    %881 = vmatprep.subr.mxu0 0.0
    %882 = vmatpush1.msra.mxu0 0.0
    %883 = vmatprep.subr.mxu0 0.0
    %884 = vmatpush1.msra.mxu0 0.0
    %885 = vmatprep.subr.mxu0 0.0
    %886 = vmatpush1.msra.mxu0 0.0
    %887 = vmatprep.subr.mxu0 0.0
    %888 = vmatpush1.msra.mxu0 0.0
    %889 = vmatprep.subr.mxu0 0.0
    %890 = vmatpush1.msra.mxu0 0.0
    %891 = vmatprep.subr.mxu0 0.0
    %892 = vmatpush1.msra.mxu0 0.0
    %893 = vmatprep.subr.mxu0 0.0
    %894 = vmatpush1.msra.mxu0 0.0
    %895 = vmatprep.subr.mxu0 0.0
    %896 = vmatpush1.msra.mxu0 0.0
    %897 = vmatprep.subr.mxu0 0.0
    %898 = vmatpush1.msra.mxu0 0.0
    %899 = vmatprep.subr.mxu0 0.0
    %900 = vmatpush1.msra.mxu0 0.0
    %901 = vmatprep.subr.mxu0 0.0
    %902 = vmatpush1.msra.mxu0 0.0
    %903 = vmatprep.subr.mxu0 0.0
    %904 = vmatpush1.msra.mxu0 0.0
    %905 = vmatprep.subr.mxu0 0.0
    %906 = vmatpush1.msra.mxu0 0.0
    %907 = vmatprep.subr.mxu0 0.0
    %908 = vmatpush1.msra.mxu0 0.0
    %909 = vmatprep.subr.mxu0 0.0
    %910 = vmatpush1.msra.mxu0 0.0
    %911 = vmatprep.subr.mxu0 0.0
    %912 = vmatpush1.msra.mxu0 0.0
    %913 = vmatprep.mubr.f32.mxu0 0.0
    %v914 = vand.u32 %v34, 4294901760
    %915 = vmatmul.mubr.f32.gmra.mrb[0].mxu0 %v914
    %v916 = vpop.f32.mrb[0].mxu0
    %v917 = vadd.f32 %v723, %v916
    %v918 = vpop.f32.mrb[0].mxu0
    %919 = vmatprep.mubr.f32.mxu0 0.0
    %v920 = vand.u32 %v37, 4294901760
    %921 = vmatmul.mubr.f32.gmra.mrb[0].mxu0 %v920
    %v922 = vpop.f32.mrb[0].mxu0
    %v923 = vadd.f32 %v731, %v922
    %v924 = vpop.f32.mrb[0].mxu0
    %925 = vmatprep.mubr.f32.mxu0 0.0
    %v926 = vand.u32 %v40, 4294901760
    %927 = vmatmul.mubr.f32.gmra.mrb[0].mxu0 %v926
    %v928 = vpop.f32.mrb[0].mxu0
    %v929 = vadd.f32 %v739, %v928
    %v930 = vpop.f32.mrb[0].mxu0
    %931 = vmatprep.mubr.f32.mxu0 0.0
    %v932 = vand.u32 %v43, 4294901760
    %933 = vmatmul.mubr.f32.gmra.mrb[0].mxu0 %v932
    %v934 = vpop.f32.mrb[0].mxu0
    %v935 = vadd.f32 %v747, %v934
    %v936 = vpop.f32.mrb[0].mxu0
    %937 = vmatprep.mubr.f32.mxu0 0.0
    %v938 = vand.u32 %v46, 4294901760
    %939 = vmatmul.mubr.f32.gmra.mrb[0].mxu0 %v938
    %v940 = vpop.f32.mrb[0].mxu0
    %v941 = vadd.f32 %v755, %v940
    %v942 = vpop.f32.mrb[0].mxu0
    %943 = vmatprep.mubr.f32.mxu0 0.0
    %v944 = vand.u32 %v49, 4294901760
    %945 = vmatmul.mubr.f32.gmra.mrb[0].mxu0 %v944
    %v946 = vpop.f32.mrb[0].mxu0
    %v947 = vadd.f32 %v763, %v946
    %v948 = vpop.f32.mrb[0].mxu0
    %949 = vmatprep.mubr.f32.mxu0 0.0
    %v950 = vand.u32 %v52, 4294901760
    %951 = vmatmul.mubr.f32.gmra.mrb[0].mxu0 %v950
    %v952 = vpop.f32.mrb[0].mxu0
    %v953 = vadd.f32 %v771, %v952
    %v954 = vpop.f32.mrb[0].mxu0
    %955 = vmatprep.mubr.f32.mxu0 0.0
    %v956 = vand.u32 %v55, 4294901760
    %957 = vmatmul.mubr.f32.gmra.mrb[0].mxu0 %v956
    %v958 = vpop.f32.mrb[0].mxu0
    %v959 = vadd.f32 %v779, %v958
    %v960 = vpop.f32.mrb[0].mxu0
    %961 = vmatprep.mubr.f32.mxu0 0.0
    %v962 = vand.u32 %v58, 4294901760
    %963 = vmatmul.mubr.f32.gmra.mrb[0].mxu0 %v962
    %v964 = vpop.f32.mrb[0].mxu0
    %v965 = vadd.f32 %v787, %v964
    %v966 = vpop.f32.mrb[0].mxu0
    %967 = vmatprep.mubr.f32.mxu0 0.0
    %v968 = vand.u32 %v61, 4294901760
    %969 = vmatmul.mubr.f32.gmra.mrb[0].mxu0 %v968
    %v970 = vpop.f32.mrb[0].mxu0
    %v971 = vadd.f32 %v795, %v970
    %v972 = vpop.f32.mrb[0].mxu0
    %973 = vmatprep.mubr.f32.mxu0 0.0
    %v974 = vand.u32 %v64, 4294901760
    %975 = vmatmul.mubr.f32.gmra.mrb[0].mxu0 %v974
    %v976 = vpop.f32.mrb[0].mxu0
    %v977 = vadd.f32 %v803, %v976
    %v978 = vpop.f32.mrb[0].mxu0
    %979 = vmatprep.mubr.f32.mxu0 0.0
    %v980 = vand.u32 %v67, 4294901760
    %981 = vmatmul.mubr.f32.gmra.mrb[0].mxu0 %v980
    %v982 = vpop.f32.mrb[0].mxu0
    %v983 = vadd.f32 %v811, %v982
    %v984 = vpop.f32.mrb[0].mxu0
    %985 = vmatprep.mubr.f32.mxu0 0.0
    %v986 = vand.u32 %v70, 4294901760
    %987 = vmatmul.mubr.f32.gmra.mrb[0].mxu0 %v986
    %v988 = vpop.f32.mrb[0].mxu0
    %v989 = vadd.f32 %v819, %v988
    %v990 = vpop.f32.mrb[0].mxu0
    %991 = vmatprep.mubr.f32.mxu0 0.0
    %v992 = vand.u32 %v73, 4294901760
    %993 = vmatmul.mubr.f32.gmra.mrb[0].mxu0 %v992
    %v994 = vpop.f32.mrb[0].mxu0
    %v995 = vadd.f32 %v827, %v994
    %v996 = vpop.f32.mrb[0].mxu0
    %997 = vmatprep.mubr.f32.mxu0 0.0
    %v998 = vand.u32 %v76, 4294901760
    %999 = vmatmul.mubr.f32.gmra.mrb[0].mxu0 %v998
    %v1000 = vpop.f32.mrb[0].mxu0
    %v1001 = vadd.f32 %v835, %v1000
    %v1002 = vpop.f32.mrb[0].mxu0
    %1003 = vmatprep.mubr.f32.mxu0 0.0
    %v1004 = vand.u32 %v79, 4294901760
    %1005 = vmatmul.mubr.f32.gmra.mrb[0].mxu0 %v1004
    %v1006 = vpop.f32.mrb[0].mxu0
    %v1007 = vadd.f32 %v843, %v1006
    %v1008 = vpop.f32.mrb[0].mxu0
    %1009 = vdwg.mxu0
    %1010 = vmatprep.subr.mxu0 0.0
    %v1011 = vand.u32 %v31, 4294901760
    %1012 = vmatpush1.msra.mxu0 %v1011
    %1013 = vmatprep.subr.mxu0 0.0
    %1014 = vmatpush1.msra.mxu0 0.0
    %1015 = vmatprep.subr.mxu0 0.0
    %1016 = vmatpush1.msra.mxu0 0.0
    %1017 = vmatprep.subr.mxu0 0.0
    %1018 = vmatpush1.msra.mxu0 0.0
    %1019 = vmatprep.subr.mxu0 0.0
    %1020 = vmatpush1.msra.mxu0 0.0
    %1021 = vmatprep.subr.mxu0 0.0
    %1022 = vmatpush1.msra.mxu0 0.0
    %1023 = vmatprep.subr.mxu0 0.0
    %1024 = vmatpush1.msra.mxu0 0.0
    %1025 = vmatprep.subr.mxu0 0.0
    %1026 = vmatpush1.msra.mxu0 0.0
    %1027 = vmatprep.subr.mxu0 0.0
    %1028 = vmatpush1.msra.mxu0 0.0
    %1029 = vmatprep.subr.mxu0 0.0
    %1030 = vmatpush1.msra.mxu0 0.0
    %1031 = vmatprep.subr.mxu0 0.0
    %1032 = vmatpush1.msra.mxu0 0.0
    %1033 = vmatprep.subr.mxu0 0.0
    %1034 = vmatpush1.msra.mxu0 0.0
    %1035 = vmatprep.subr.mxu0 0.0
    %1036 = vmatpush1.msra.mxu0 0.0
    %1037 = vmatprep.subr.mxu0 0.0
    %1038 = vmatpush1.msra.mxu0 0.0
    %1039 = vmatprep.subr.mxu0 0.0
    %1040 = vmatpush1.msra.mxu0 0.0
    %1041 = vmatprep.subr.mxu0 0.0
    %1042 = vmatpush1.msra.mxu0 0.0
    %1043 = vmatprep.subr.mxu0 0.0
    %1044 = vmatpush1.msra.mxu0 0.0
    %1045 = vmatprep.subr.mxu0 0.0
    %1046 = vmatpush1.msra.mxu0 0.0
    %1047 = vmatprep.subr.mxu0 0.0
    %1048 = vmatpush1.msra.mxu0 0.0
    %1049 = vmatprep.subr.mxu0 0.0
    %1050 = vmatpush1.msra.mxu0 0.0
    %1051 = vmatprep.subr.mxu0 0.0
    %1052 = vmatpush1.msra.mxu0 0.0
    %1053 = vmatprep.subr.mxu0 0.0
    %1054 = vmatpush1.msra.mxu0 0.0
    %1055 = vmatprep.subr.mxu0 0.0
    %1056 = vmatpush1.msra.mxu0 0.0
    %1057 = vmatprep.subr.mxu0 0.0
    %1058 = vmatpush1.msra.mxu0 0.0
    %1059 = vmatprep.subr.mxu0 0.0
    %1060 = vmatpush1.msra.mxu0 0.0
    %1061 = vmatprep.subr.mxu0 0.0
    %1062 = vmatpush1.msra.mxu0 0.0
    %1063 = vmatprep.subr.mxu0 0.0
    %1064 = vmatpush1.msra.mxu0 0.0
    %1065 = vmatprep.subr.mxu0 0.0
    %1066 = vmatpush1.msra.mxu0 0.0
    %1067 = vmatprep.subr.mxu0 0.0
    %1068 = vmatpush1.msra.mxu0 0.0
    %1069 = vmatprep.subr.mxu0 0.0
    %1070 = vmatpush1.msra.mxu0 0.0
    %1071 = vmatprep.subr.mxu0 0.0
    %1072 = vmatpush1.msra.mxu0 0.0
    %1073 = vmatprep.subr.mxu0 0.0
    %1074 = vmatpush1.msra.mxu0 0.0
    %1075 = vmatprep.mubr.f32.mxu0 0.0
    %v1076 = vand.u32 %v34, 4294901760
    %1077 = vmatmul.mubr.f32.gmra.mrb[0].mxu0 %v1076
    %v1078 = vpop.f32.mrb[0].mxu0
    %v1079 = vadd.f32 %v917, %v1078
    %v1080 = vpop.f32.mrb[0].mxu0
    %1081 = vmatprep.mubr.f32.mxu0 0.0
    %v1082 = vand.u32 %v37, 4294901760
    %1083 = vmatmul.mubr.f32.gmra.mrb[0].mxu0 %v1082
    %v1084 = vpop.f32.mrb[0].mxu0
    %v1085 = vadd.f32 %v923, %v1084
    %v1086 = vpop.f32.mrb[0].mxu0
    %1087 = vmatprep.mubr.f32.mxu0 0.0
    %v1088 = vand.u32 %v40, 4294901760
    %1089 = vmatmul.mubr.f32.gmra.mrb[0].mxu0 %v1088
    %v1090 = vpop.f32.mrb[0].mxu0
    %v1091 = vadd.f32 %v929, %v1090
    %v1092 = vpop.f32.mrb[0].mxu0
    %1093 = vmatprep.mubr.f32.mxu0 0.0
    %v1094 = vand.u32 %v43, 4294901760
    %1095 = vmatmul.mubr.f32.gmra.mrb[0].mxu0 %v1094
    %v1096 = vpop.f32.mrb[0].mxu0
    %v1097 = vadd.f32 %v935, %v1096
    %v1098 = vpop.f32.mrb[0].mxu0
    %1099 = vmatprep.mubr.f32.mxu0 0.0
    %v1100 = vand.u32 %v46, 4294901760
    %1101 = vmatmul.mubr.f32.gmra.mrb[0].mxu0 %v1100
    %v1102 = vpop.f32.mrb[0].mxu0
    %v1103 = vadd.f32 %v941, %v1102
    %v1104 = vpop.f32.mrb[0].mxu0
    %1105 = vmatprep.mubr.f32.mxu0 0.0
    %v1106 = vand.u32 %v49, 4294901760
    %1107 = vmatmul.mubr.f32.gmra.mrb[0].mxu0 %v1106
    %v1108 = vpop.f32.mrb[0].mxu0
    %v1109 = vadd.f32 %v947, %v1108
    %v1110 = vpop.f32.mrb[0].mxu0
    %1111 = vmatprep.mubr.f32.mxu0 0.0
    %v1112 = vand.u32 %v52, 4294901760
    %1113 = vmatmul.mubr.f32.gmra.mrb[0].mxu0 %v1112
    %v1114 = vpop.f32.mrb[0].mxu0
    %v1115 = vadd.f32 %v953, %v1114
    %v1116 = vpop.f32.mrb[0].mxu0
    %1117 = vmatprep.mubr.f32.mxu0 0.0
    %v1118 = vand.u32 %v55, 4294901760
    %1119 = vmatmul.mubr.f32.gmra.mrb[0].mxu0 %v1118
    %v1120 = vpop.f32.mrb[0].mxu0
    %v1121 = vadd.f32 %v959, %v1120
    %v1122 = vpop.f32.mrb[0].mxu0
    %1123 = vmatprep.mubr.f32.mxu0 0.0
    %v1124 = vand.u32 %v58, 4294901760
    %1125 = vmatmul.mubr.f32.gmra.mrb[0].mxu0 %v1124
    %v1126 = vpop.f32.mrb[0].mxu0
    %v1127 = vadd.f32 %v965, %v1126
    %v1128 = vpop.f32.mrb[0].mxu0
    %1129 = vmatprep.mubr.f32.mxu0 0.0
    %v1130 = vand.u32 %v61, 4294901760
    %1131 = vmatmul.mubr.f32.gmra.mrb[0].mxu0 %v1130
    %v1132 = vpop.f32.mrb[0].mxu0
    %v1133 = vadd.f32 %v971, %v1132
    %v1134 = vpop.f32.mrb[0].mxu0
    %1135 = vmatprep.mubr.f32.mxu0 0.0
    %v1136 = vand.u32 %v64, 4294901760
    %1137 = vmatmul.mubr.f32.gmra.mrb[0].mxu0 %v1136
    %v1138 = vpop.f32.mrb[0].mxu0
    %v1139 = vadd.f32 %v977, %v1138
    %v1140 = vpop.f32.mrb[0].mxu0
    %1141 = vmatprep.mubr.f32.mxu0 0.0
    %v1142 = vand.u32 %v67, 4294901760
    %1143 = vmatmul.mubr.f32.gmra.mrb[0].mxu0 %v1142
    %v1144 = vpop.f32.mrb[0].mxu0
    %v1145 = vadd.f32 %v983, %v1144
    %v1146 = vpop.f32.mrb[0].mxu0
    %1147 = vmatprep.mubr.f32.mxu0 0.0
    %v1148 = vand.u32 %v70, 4294901760
    %1149 = vmatmul.mubr.f32.gmra.mrb[0].mxu0 %v1148
    %v1150 = vpop.f32.mrb[0].mxu0
    %v1151 = vadd.f32 %v989, %v1150
    %v1152 = vpop.f32.mrb[0].mxu0
    %1153 = vmatprep.mubr.f32.mxu0 0.0
    %v1154 = vand.u32 %v73, 4294901760
    %1155 = vmatmul.mubr.f32.gmra.mrb[0].mxu0 %v1154
    %v1156 = vpop.f32.mrb[0].mxu0
    %v1157 = vadd.f32 %v995, %v1156
    %v1158 = vpop.f32.mrb[0].mxu0
    %1159 = vmatprep.mubr.f32.mxu0 0.0
    %v1160 = vand.u32 %v76, 4294901760
    %1161 = vmatmul.mubr.f32.gmra.mrb[0].mxu0 %v1160
    %v1162 = vpop.f32.mrb[0].mxu0
    %v1163 = vadd.f32 %v1001, %v1162
    %v1164 = vpop.f32.mrb[0].mxu0
    %1165 = vmatprep.mubr.f32.mxu0 0.0
    %v1166 = vand.u32 %v79, 4294901760
    %1167 = vmatmul.mubr.f32.gmra.mrb[0].mxu0 %v1166
    %v1168 = vpop.f32.mrb[0].mxu0
    %v1169 = vadd.f32 %v1007, %v1168
    %v1170 = vpop.f32.mrb[0].mxu0
    %1171 = vdwg.mxu0
    %vm1172 = vcmask 130048
    %v1173 = vsel %vm1172, %v1079, 0.0
    %v1174 = vsel %vm1172, %v1085, 0.0
    %v1175 = vadd.f32 %v1173, %v1174
    %v1176 = vsel %vm1172, %v1091, 0.0
    %v1177 = vadd.f32 %v1175, %v1176
    %v1178 = vsel %vm1172, %v1097, 0.0
    %v1179 = vadd.f32 %v1177, %v1178
    %v1180 = vsel %vm1172, %v1103, 0.0
    %v1181 = vadd.f32 %v1179, %v1180
    %v1182 = vsel %vm1172, %v1109, 0.0
    %v1183 = vadd.f32 %v1181, %v1182
    %v1184 = vsel %vm1172, %v1115, 0.0
    %v1185 = vadd.f32 %v1183, %v1184
    %v1186 = vsel %vm1172, %v1121, 0.0
    %v1187 = vadd.f32 %v1185, %v1186
    %v1188 = vsel %vm1172, %v1127, 0.0
    %v1189 = vadd.f32 %v1187, %v1188
    %v1190 = vsel %vm1172, %v1133, 0.0
    %v1191 = vadd.f32 %v1189, %v1190
    %v1192 = vsel %vm1172, %v1139, 0.0
    %v1193 = vadd.f32 %v1191, %v1192
    %v1194 = vsel %vm1172, %v1145, 0.0
    %v1195 = vadd.f32 %v1193, %v1194
    %v1196 = vsel %vm1172, %v1151, 0.0
    %v1197 = vadd.f32 %v1195, %v1196
    %v1198 = vsel %vm1172, %v1157, 0.0
    %v1199 = vadd.f32 %v1197, %v1198
    %v1200 = vsel %vm1172, %v1163, 0.0
    %v1201 = vadd.f32 %v1199, %v1200
    %v1202 = vsel %vm1172, %v1169, 0.0
    %v1203 = vadd.f32 %v1201, %v1202
    %v1204 = vrot.slane %v1203, 4
    %v1205 = vadd.f32 %v1203, %v1204
    %v1206 = vrot.slane %v1205, 2
    %v1207 = vadd.f32 %v1205, %v1206
    %v1208 = vrot.slane %v1207, 1
    %v1209 = vadd.f32 %v1207, %v1208
    %vm1210 = vcmask 122880
    %1211 = vst.msk [vmem:[#allocation2] sm:$0x1] %vm1210, %v1209
    %v1212 = vmul.f32 %v1079, %v1079
    %v1213 = vmul.f32 %v1085, %v1085
    %v1214 = vmul.f32 %v1091, %v1091
    %v1215 = vmul.f32 %v1097, %v1097
    %v1216 = vmul.f32 %v1103, %v1103
    %v1217 = vmul.f32 %v1109, %v1109
    %v1218 = vmul.f32 %v1115, %v1115
    %v1219 = vmul.f32 %v1121, %v1121
    %v1220 = vmul.f32 %v1127, %v1127
    %v1221 = vmul.f32 %v1133, %v1133
    %v1222 = vmul.f32 %v1139, %v1139
    %v1223 = vmul.f32 %v1145, %v1145
    %v1224 = vmul.f32 %v1151, %v1151
    %v1225 = vmul.f32 %v1157, %v1157
    %v1226 = vmul.f32 %v1163, %v1163
    %v1227 = vmul.f32 %v1169, %v1169
    %v1228 = vsel %vm1172, %v1212, 0.0
    %v1229 = vsel %vm1172, %v1213, 0.0
    %v1230 = vadd.f32 %v1228, %v1229
    %v1231 = vsel %vm1172, %v1214, 0.0
    %v1232 = vadd.f32 %v1230, %v1231
    %v1233 = vsel %vm1172, %v1215, 0.0
    %v1234 = vadd.f32 %v1232, %v1233
    %v1235 = vsel %vm1172, %v1216, 0.0
    %v1236 = vadd.f32 %v1234, %v1235
    %v1237 = vsel %vm1172, %v1217, 0.0
    %v1238 = vadd.f32 %v1236, %v1237
    %v1239 = vsel %vm1172, %v1218, 0.0
    %v1240 = vadd.f32 %v1238, %v1239
    %v1241 = vsel %vm1172, %v1219, 0.0
    %v1242 = vadd.f32 %v1240, %v1241
    %v1243 = vsel %vm1172, %v1220, 0.0
    %v1244 = vadd.f32 %v1242, %v1243
    %v1245 = vsel %vm1172, %v1221, 0.0
    %v1246 = vadd.f32 %v1244, %v1245
    %v1247 = vsel %vm1172, %v1222, 0.0
    %v1248 = vadd.f32 %v1246, %v1247
    %v1249 = vsel %vm1172, %v1223, 0.0
    %v1250 = vadd.f32 %v1248, %v1249
    %v1251 = vsel %vm1172, %v1224, 0.0
    %v1252 = vadd.f32 %v1250, %v1251
    %v1253 = vsel %vm1172, %v1225, 0.0
    %v1254 = vadd.f32 %v1252, %v1253
    %v1255 = vsel %vm1172, %v1226, 0.0
    %v1256 = vadd.f32 %v1254, %v1255
    %v1257 = vsel %vm1172, %v1227, 0.0
    %v1258 = vadd.f32 %v1256, %v1257
    %v1259 = vrot.slane %v1258, 4
    %v1260 = vadd.f32 %v1258, %v1259
    %v1261 = vrot.slane %v1260, 2
    %v1262 = vadd.f32 %v1260, %v1261
    %v1263 = vrot.slane %v1262, 1
    %v1264 = vadd.f32 %v1262, %v1263
    %1265 = vst.msk [vmem:[#allocation4] sm:$0x1] %vm1210, %v1264
    // Predicated region
    $region10: #{tpu_custom_call.1} parent=1 // pred_check
      _
    $region11: #{tpu_custom_call.1} parent=1 // pred_check_branch
      %1267 = sbr.rel (0) target = $region13
    $region12: #{tpu_custom_call.1} parent=1 // pred_region
      %s1269 = ssub.s32 16, 16
      %1270 = vsyncadd [#allocation3], %s1269
      %s1272 = sshll.u32 [#allocation2], 4
      %s1273 = int_to_ptr.vmem [resolvable:$true] %s1272
      %1275 = dma.vmem_to_hbm [thread:$0]  %s1273, 16, %s2, [#allocation3]
    $region13: #{tpu_custom_call.1} parent=1 // pred_fallthru
      _
    // Predicated region
    $region14: #{tpu_custom_call.1} parent=1 // pred_check
      _
    $region15: #{tpu_custom_call.1} parent=1 // pred_check_branch
      %1277 = sbr.rel (0) target = $region17
    $region16: #{tpu_custom_call.1} parent=1 // pred_region
      %s1279 = ssub.s32 16, 16
      %1280 = vsyncadd [#allocation5], %s1279
      %s1282 = sshll.u32 [#allocation4], 4
      %s1283 = int_to_ptr.vmem [resolvable:$true] %s1282
      %1285 = dma.vmem_to_hbm [thread:$0]  %s1283, 16, %s3, [#allocation5]
    $region17: #{tpu_custom_call.1} parent=1 // pred_fallthru
      _
    // Predicated region
    $region18: #{tpu_custom_call.1} parent=1 // pred_check
      _
    $region19: #{tpu_custom_call.1} parent=1 // pred_check_branch
      %1287 = sbr.rel (0) target = $region21
    $region20: #{tpu_custom_call.1} parent=1 // pred_region
      %1288 = dma.done [#allocation3], 16
    $region21: #{tpu_custom_call.1} parent=1 // pred_fallthru
      _
    // Predicated region
    $region22: #{tpu_custom_call.1} parent=1 // pred_check
      _
    $region23: #{tpu_custom_call.1} parent=1 // pred_check_branch
      %1290 = sbr.rel (0) target = $region25
    $region24: #{tpu_custom_call.1} parent=1 // pred_region
      %1291 = dma.done [#allocation5], 16
    $region25: #{tpu_custom_call.1} parent=1 // pred_fallthru
      _
    %1292 = vsyncpa [#allocation3], 1
    %1293 = vsyncpa [#allocation5], 1

</llo_original>
